<compile_context>
chip_gen: v6e
topology: v6e:2x2x1
jax: 0.10.0
libtpu: 0.0.40
codegen_flags: <defaults>
</compile_context>

<pallas_src>
import jax
import jax.numpy as jnp
from jax.experimental import pallas as pl
from jax.experimental.pallas import tpu as pltpu


# ----------------------------------------------------------------------------
# Kernel bodies
# ----------------------------------------------------------------------------

def _gfp_compute(xq_in, xkv_in, w2, gamma, beta):
    """Core GFP math for one tile.

    xq_in:  [Bt, bn, C]  query rows (input dtype, fed to MXU as-is)
    xkv_in: [Bt, N,  C]  all nodes of the batch block (keys/values)
    w2/gamma/beta: [C] f32
    Returns f32 [Bt, bn, C].
    """
    f32 = jnp.float32
    xq = xq_in.astype(f32)

    # First softmax: sim = softmax_j(xq @ xkv^T).  Contraction on the last dims
    # (no materialized transpose), MXU in the input dtype, f32 accumulate.
    sim = jnp.einsum("bnc,bmc->bnm", xq_in, xkv_in, preferred_element_type=f32)
    sim = jnp.exp(sim - jnp.max(sim, axis=-1, keepdims=True))
    sim = sim * pl.reciprocal(jnp.sum(sim, axis=-1, keepdims=True), approx=True)

    # attn_fc(cat(x_i, x_j)) = a_i + b_j; a_i is constant along the softmax axis
    # and cancels exactly, so only b_j is kept.  VPU multiply + lane reduce.
    b = jnp.sum(xkv_in.astype(f32) * w2, axis=-1)                    # [Bt, N]

    # Second softmax over j, with an analytic max bound instead of an exact
    # [Bt, bn, N] cross-lane max: sim entries are softmax outputs (<= 1, plus a
    # tiny slack from the approx reciprocal), hence
    #   max_j(sim[i,j] + b[j]) <= 1 + max_j(b[j]) + margin.
    # Softmax is shift-invariant, so the result is unchanged.
    m = 1.0 + jnp.max(b, axis=-1, keepdims=True) + 0.01              # [Bt, 1]
    p = jnp.exp(sim + (b - m)[:, None, :])                           # [Bt, bn, N]
    attn = p * pl.reciprocal(jnp.sum(p, axis=-1, keepdims=True), approx=True)

    # Aggregate (MXU in input dtype) + residual + LayerNorm_C (eps = 1e-6).
    out = jnp.einsum("bnm,bmc->bnc", attn.astype(xkv_in.dtype), xkv_in,
                     preferred_element_type=f32)
    y = out + xq
    mean = jnp.mean(y, axis=-1, keepdims=True)
    var = jnp.mean((y - mean) ** 2, axis=-1, keepdims=True)
    y = (y - mean) * jax.lax.rsqrt(var + 1e-6)
    return y * gamma + beta


def _gfp_kernel_single(x_ref, w2_ref, gamma_ref, beta_ref, o_ref):
    """block_n == N: one x block serves as both query rows and keys/values."""
    x = x_ref[...]
    y = _gfp_compute(x, x,
                     w2_ref[0].astype(jnp.float32),
                     gamma_ref[0].astype(jnp.float32),
                     beta_ref[0].astype(jnp.float32))
    # o_ref may be (Bt, 1, N*C) (lane-dense fold) or (Bt, N, C).
    o_ref[...] = y.reshape(o_ref.shape).astype(o_ref.dtype)


def _gfp_kernel_rowtiled(xq_ref, xkv_ref, w2_ref, gamma_ref, beta_ref, o_ref):
    """block_n < N: Q rows are tiled; K/V block stays resident across the row axis."""
    y = _gfp_compute(xq_ref[...], xkv_ref[...],
                     w2_ref[0].astype(jnp.float32),
                     gamma_ref[0].astype(jnp.float32),
                     beta_ref[0].astype(jnp.float32))
    o_ref[...] = y.astype(o_ref.dtype)


# ----------------------------------------------------------------------------
# Tiling heuristics (generation-aware)
# ----------------------------------------------------------------------------

def _tpu_generation_info():
    """Returns (tensorcores_per_chip, physical VMEM bytes per TensorCore)."""
    kind = ""
    try:
        kind = jax.devices()[0].device_kind.lower()
    except Exception:
        pass
    if "v7" in kind:
        return 2, 64 << 20      # v7x: 2 TCs/chip, 64 MiB VMEM per TC
    # v5e / v6e (and default): 1 TC, 128 MiB VMEM
    return 1, 128 << 20


def _footprint_bytes(block_b, block_n, N, C, itemsize):
    """Rough per-step VMEM footprint: f32 attention intermediates + double-buffered
    pipeline blocks + in-kernel f32 working copies."""
    f32 = 4
    inter = 3 * block_b * block_n * N * f32                     # sim / p / attn
    io = (2 * block_b * N * C * itemsize                        # K/V (double-buffered)
          + 2 * block_b * block_n * C * itemsize                # Q
          + 2 * block_b * block_n * C * itemsize)               # out
    work = (4 * block_b * block_n * C * f32                     # xq / out / y f32 temps
            + block_b * N * C * f32                             # xkv f32 temp for b_j
            + 2 * block_b * N * f32)                            # b / m
    return inter + io + work


def _choose_tiling(B, N, C, itemsize, num_tc, budget):
    """Pick (block_b, block_n).

    block_n: full N when the f32 intermediates fit the budget at block_b=1;
    otherwise the largest 8-aligned (128-preferred) divisor of N that fits.
    block_b: the largest divisor of B that fits the budget.  Only on >=2-TC
    chips (v7x) do we additionally keep >= num_tc grid steps when possible so
    the megacore split has work for every core; single-TC chips (v5e/v6e) take
    the biggest block (fewest steps = least per-step overhead).
    """
    def fits(bb, bn):
        return _footprint_bytes(bb, bn, N, C, itemsize) <= budget

    block_n = N
    if not fits(1, N):
        divs = [d for d in range(N - 1, 0, -1)
                if N % d == 0 and (d % 128 == 0 or d % 8 == 0)]
        divs.sort(key=lambda d: (d % 128 != 0, -d))   # prefer 128-aligned, largest
        block_n = next((d for d in divs if fits(1, d)),
                       divs[-1] if divs else N)

    grid_n = N // block_n
    block_b = 1
    for bb in sorted(d for d in range(1, B + 1) if B % d == 0):
        if not fits(bb, block_n):
            break
        if num_tc >= 2 and bb > 1 and (B // bb) * grid_n < num_tc:
            continue   # would idle a TensorCore on a 2-TC chip
        block_b = bb
    return block_b, block_n


# ----------------------------------------------------------------------------
# Wrapper
# ----------------------------------------------------------------------------

def gfp_forward(node_features, attn_fc_w, ln_gamma, ln_beta, *,
                block_b=None, block_n=None):
    """node_features: [B, N, C]; attn_fc_w: [2C] (Linear(2C,1) weight, flat);
    ln_gamma / ln_beta: [C]."""
    B, N, C = node_features.shape
    dtype = node_features.dtype
    itemsize = jnp.dtype(dtype).itemsize

    # Only the second half of the attn_fc weight matters (a_i cancels in the
    # softmax).  Lane-dense (1, C) layout for weight and LN affine params.
    w2 = attn_fc_w.reshape(-1)[C:].reshape(1, C)
    gamma = ln_gamma.reshape(1, C)
    beta = ln_beta.reshape(1, C)

    num_tc, vmem_phys = _tpu_generation_info()
    budget = vmem_phys // 2   # leave half of physical VMEM for compiler temps etc.

    if block_b is None or block_n is None:
        auto_bb, auto_bn = _choose_tiling(B, N, C, itemsize, num_tc, budget)
        if block_n is None:
            block_n = auto_bn
        if block_b is None:
            block_b = auto_bb if block_n == auto_bn else 1
    assert B % block_b == 0 and N % block_n == 0
    grid_b = B // block_b
    grid_n = N // block_n

    footprint = _footprint_bytes(block_b, block_n, N, C, itemsize)
    vmem_limit = int(min(vmem_phys - (16 << 20), max(32 << 20, 2 * footprint)))

    cost = pl.CostEstimate(
        flops=4 * B * N * N * C,            # two N x N x C matmuls
        transcendentals=2 * B * N * N,      # two exp passes
        bytes_accessed=(2 * B * N * C + 3 * C) * itemsize,
    )
    compiler_params = pltpu.CompilerParams(
        dimension_semantics=("parallel", "parallel"),
        vmem_limit_bytes=vmem_limit,
    )
    param_specs = [
        pl.BlockSpec((1, C), lambda b, i: (0, 0)),   # w2 (replicated)
        pl.BlockSpec((1, C), lambda b, i: (0, 0)),   # LN gamma
        pl.BlockSpec((1, C), lambda b, i: (0, 0)),   # LN beta
    ]

    if block_n == N:
        # Single block over the row axis: one x operand (one HBM read of x).
        # Lane-dense output: fold (N, C) -> (1, N*C) when C is narrower than a
        # laneset and N*C fills at least two whole lanesets (same HBM layout, so
        # the wrapper reshape is free).  For very small N*C the in-kernel
        # reshape repack can eat the dense-store win, hence the >= 256 gate.
        fold_out = (C % 128 != 0) and ((N * C) % 128 == 0) and (N * C >= 256)
        if fold_out:
            out_shape = jax.ShapeDtypeStruct((B, 1, N * C), dtype)
            out_spec = pl.BlockSpec((block_b, 1, N * C), lambda b, i: (b, 0, 0))
        else:
            out_shape = jax.ShapeDtypeStruct((B, N, C), dtype)
            out_spec = pl.BlockSpec((block_b, N, C), lambda b, i: (b, 0, 0))

        out = pl.pallas_call(
            _gfp_kernel_single,
            out_shape=out_shape,
            grid_spec=pltpu.PrefetchScalarGridSpec(
                num_scalar_prefetch=0,
                grid=(grid_b, grid_n),
                in_specs=[pl.BlockSpec((block_b, N, C), lambda b, i: (b, 0, 0))]
                         + param_specs,
                out_specs=out_spec,
            ),
            compiler_params=compiler_params,
            cost_estimate=cost,
        )(node_features, w2, gamma, beta)
    else:
        # Row-tiled path: Q block walks the row axis, K/V block index is constant
        # along it (stays resident, fetched once per batch block).
        out_shape = jax.ShapeDtypeStruct((B, N, C), dtype)
        out = pl.pallas_call(
            _gfp_kernel_rowtiled,
            out_shape=out_shape,
            grid_spec=pltpu.PrefetchScalarGridSpec(
                num_scalar_prefetch=0,
                grid=(grid_b, grid_n),
                in_specs=[
                    pl.BlockSpec((block_b, block_n, C), lambda b, i: (b, i, 0)),  # Q rows
                    pl.BlockSpec((block_b, N, C), lambda b, i: (b, 0, 0)),        # K/V (resident)
                ] + param_specs,
                out_specs=pl.BlockSpec((block_b, block_n, C), lambda b, i: (b, i, 0)),
            ),
            compiler_params=compiler_params,
            cost_estimate=cost,
        )(node_features, node_features, w2, gamma, beta)

    return out.reshape(B, N, C)


# ----------------------------------------------------------------------------
# Reference + tests
# ----------------------------------------------------------------------------

def _gfp_reference(x, attn_fc_w, gamma, beta):
    """Pure-JAX reference mirroring the PyTorch forward (eval, adj_matrix=None)."""
    B, N, C = x.shape
    xf = x.astype(jnp.float32)
    w1 = attn_fc_w[:C]
    w2 = attn_fc_w[C:]
    scores = xf @ w1[:, None] + (xf @ w2[:, None]).transpose(0, 2, 1)   # [B,N,N]
    sim = jax.nn.softmax(jnp.einsum("bnc,bmc->bnm", xf, xf), axis=-1)
    attn = jax.nn.softmax(scores + sim, axis=-1)
    out = jnp.einsum("bnm,bmc->bnc", attn, xf)
    y = out + xf
    mean = jnp.mean(y, axis=-1, keepdims=True)
    var = jnp.mean((y - mean) ** 2, axis=-1, keepdims=True)
    return ((y - mean) * jax.lax.rsqrt(var + 1e-6)) * gamma + beta


def _run_case(key, B, N, C, **kwargs):
    k_x, k_w, k_g, k_b = jax.random.split(key, 4)
    node_features = jax.random.normal(k_x, (B, N, C), dtype=jnp.float32)
    # attn_fc: nn.Linear(2*C, 1, bias=False) -> weight [1, 2C]; stored flat [2C].
    attn_fc_w = jax.random.normal(k_w, (2 * C,), dtype=jnp.float32) * 0.1
    ln_gamma = 1.0 + 0.05 * jax.random.normal(k_g, (C,), dtype=jnp.float32)
    ln_beta = 0.05 * jax.random.normal(k_b, (C,), dtype=jnp.float32)

    out = gfp_forward(node_features, attn_fc_w, ln_gamma, ln_beta, **kwargs)
    out = jax.block_until_ready(out)

    ref = _gfp_reference(node_features, attn_fc_w, ln_gamma, ln_beta)
    assert out.shape == (B, N, C)
    err = float(jnp.max(jnp.abs(out - ref)))
    # approx=True EUP reciprocals in the two softmax denominators add a small
    # (~1e-3-level) relative error vs. the exact-arithmetic reference.
    assert jnp.allclose(out, ref, atol=2e-3, rtol=2e-3), err


if __name__ == "__main__":
    # in_features == out_features is required by the PyTorch forward
    # (residual + attn_fc dims).
    key = jax.random.PRNGKey(0)
    k1, k2, k3 = jax.random.split(key, 3)
    _run_case(k1, B=2, N=8, C=32)                 # single-block path, folded lane-dense store
    _run_case(k2, B=8, N=16, C=32)                # batched-block path
    _run_case(k3, B=2, N=16, C=32, block_n=8)     # forced row-tiled path (Q tiling)
    print("KERNEL_OK")
</pallas_src>

<mosaic_0001>
module attributes {stable_mosaic.version = 11 : i64} {
  func.func @_gfp_kernel_single(%arg0: i32, %arg1: i32, %arg2: memref<2x8x32xf32, #tpu.memory_space<vmem>>, %arg3: memref<1x32xf32, #tpu.memory_space<vmem>>, %arg4: memref<1x32xf32, #tpu.memory_space<vmem>>, %arg5: memref<1x32xf32, #tpu.memory_space<vmem>>, %arg6: memref<2x1x256xf32, #tpu.memory_space<vmem>>) attributes {dimension_semantics = [#tpu.dimension_semantics<parallel>, #tpu.dimension_semantics<parallel>], iteration_bounds = array<i64: 1, 1>, scalar_prefetch = 0 : i64, scratch_operands = 0 : i64, tpu.core_type = #tpu.core_type<tc>, window_params = [{transform_indices = @transform_0, window_bounds = array<i64: 2, 8, 32>}, {pipeline_mode = #tpu.pipeline_mode<synchronous>, transform_indices = @transform_1, window_bounds = array<i64: 1, 32>}, {pipeline_mode = #tpu.pipeline_mode<synchronous>, transform_indices = @transform_2, window_bounds = array<i64: 1, 32>}, {pipeline_mode = #tpu.pipeline_mode<synchronous>, transform_indices = @transform_3, window_bounds = array<i64: 1, 32>}, {transform_indices = @transform_4, window_bounds = array<i64: 2, 1, 256>}]} {
    %c0 = arith.constant 0 : index
    %c0_0 = arith.constant 0 : index
    %c0_1 = arith.constant 0 : index
    %0 = vector.load %arg2[%c0, %c0_0, %c0_1] : memref<2x8x32xf32, #tpu.memory_space<vmem>>, vector<2x8x32xf32>
    %c0_2 = arith.constant 0 : index
    %c0_3 = arith.constant 0 : index
    %1 = vector.load %arg3[%c0_2, %c0_3] : memref<1x32xf32, #tpu.memory_space<vmem>>, vector<1x32xf32>
    %2 = vector.shape_cast %1 : vector<1x32xf32> to vector<32xf32>
    %c0_4 = arith.constant 0 : index
    %c0_5 = arith.constant 0 : index
    %3 = vector.load %arg4[%c0_4, %c0_5] : memref<1x32xf32, #tpu.memory_space<vmem>>, vector<1x32xf32>
    %4 = vector.shape_cast %3 : vector<1x32xf32> to vector<32xf32>
    %c0_6 = arith.constant 0 : index
    %c0_7 = arith.constant 0 : index
    %5 = vector.load %arg5[%c0_6, %c0_7] : memref<1x32xf32, #tpu.memory_space<vmem>>, vector<1x32xf32>
    %6 = vector.shape_cast %5 : vector<1x32xf32> to vector<32xf32>
    "tpu.trace_start"() <{level = 10 : i32, message = "bnc,bmc->bnm"}> : () -> ()
    %cst = arith.constant dense<0.000000e+00> : vector<2x8x8xf32>
    %7 = tpu.matmul %0, %0, %cst {dimension_numbers = #tpu.dot_dimension_numbers<[2], [2], [1], [1], [0, 0, 0, 1, 1, 1], [0], [0]>} : vector<2x8x32xf32>, vector<2x8x32xf32>, vector<2x8x8xf32> -> vector<2x8x8xf32>
    "tpu.trace_stop"() : () -> ()
    %cst_8 = arith.constant dense<0xFF800000> : vector<2x8xf32>
    %8 = vector.multi_reduction <maximumf>, %7, %cst_8 [2] : vector<2x8x8xf32> to vector<2x8xf32>
    %9 = vector.shape_cast %8 : vector<2x8xf32> to vector<2x8x1xf32>
    %10 = vector.broadcast %9 : vector<2x8x1xf32> to vector<2x8x8xf32>
    %11 = arith.subf %7, %10 : vector<2x8x8xf32>
    %12 = math.exp %11 : vector<2x8x8xf32>
    %cst_9 = arith.constant dense<0.000000e+00> : vector<2x8xf32>
    %13 = vector.multi_reduction <add>, %12, %cst_9 [2] : vector<2x8x8xf32> to vector<2x8xf32>
    %14 = vector.shape_cast %13 : vector<2x8xf32> to vector<2x8x1xf32>
    %15 = tpu.reciprocal %14 {approx = true} : vector<2x8x1xf32> -> vector<2x8x1xf32>
    %16 = vector.broadcast %15 : vector<2x8x1xf32> to vector<2x8x8xf32>
    %17 = arith.mulf %12, %16 : vector<2x8x8xf32>
    %18 = vector.shape_cast %2 : vector<32xf32> to vector<1x1x32xf32>
    %19 = vector.broadcast %18 : vector<1x1x32xf32> to vector<2x8x32xf32>
    %20 = arith.mulf %0, %19 : vector<2x8x32xf32>
    %cst_10 = arith.constant dense<0.000000e+00> : vector<2x8xf32>
    %21 = vector.multi_reduction <add>, %20, %cst_10 [2] : vector<2x8x32xf32> to vector<2x8xf32>
    %cst_11 = arith.constant dense<0xFF800000> : vector<2xf32>
    %22 = vector.multi_reduction <maximumf>, %21, %cst_11 [1] : vector<2x8xf32> to vector<2xf32>
    %23 = vector.shape_cast %22 : vector<2xf32> to vector<2x1xf32>
    %cst_12 = arith.constant 1.000000e+00 : f32
    %24 = vector.broadcast %cst_12 : f32 to vector<2x1xf32>
    %25 = arith.addf %24, %23 : vector<2x1xf32>
    %cst_13 = arith.constant 0.00999999977 : f32
    %26 = vector.broadcast %cst_13 : f32 to vector<2x1xf32>
    %27 = arith.addf %25, %26 : vector<2x1xf32>
    %28 = vector.broadcast %27 : vector<2x1xf32> to vector<2x8xf32>
    %29 = arith.subf %21, %28 : vector<2x8xf32>
    %30 = vector.shape_cast %29 : vector<2x8xf32> to vector<2x1x8xf32>
    %31 = vector.broadcast %30 : vector<2x1x8xf32> to vector<2x8x8xf32>
    %32 = arith.addf %17, %31 : vector<2x8x8xf32>
    %33 = math.exp %32 : vector<2x8x8xf32>
    %cst_14 = arith.constant dense<0.000000e+00> : vector<2x8xf32>
    %34 = vector.multi_reduction <add>, %33, %cst_14 [2] : vector<2x8x8xf32> to vector<2x8xf32>
    %35 = vector.shape_cast %34 : vector<2x8xf32> to vector<2x8x1xf32>
    %36 = tpu.reciprocal %35 {approx = true} : vector<2x8x1xf32> -> vector<2x8x1xf32>
    %37 = vector.broadcast %36 : vector<2x8x1xf32> to vector<2x8x8xf32>
    %38 = arith.mulf %33, %37 : vector<2x8x8xf32>
    "tpu.trace_start"() <{level = 10 : i32, message = "bnm,bmc->bnc"}> : () -> ()
    %cst_15 = arith.constant dense<0.000000e+00> : vector<2x8x32xf32>
    %39 = tpu.matmul %38, %0, %cst_15 {dimension_numbers = #tpu.dot_dimension_numbers<[2], [1], [1], [2], [0, 0, 0, 1, 1, 2], [0], [0]>} : vector<2x8x8xf32>, vector<2x8x32xf32>, vector<2x8x32xf32> -> vector<2x8x32xf32>
    "tpu.trace_stop"() : () -> ()
    %40 = arith.addf %39, %0 : vector<2x8x32xf32>
    %cst_16 = arith.constant dense<0.000000e+00> : vector<2x8xf32>
    %41 = vector.multi_reduction <add>, %40, %cst_16 [2] : vector<2x8x32xf32> to vector<2x8xf32>
    %42 = vector.shape_cast %41 : vector<2x8xf32> to vector<2x8x1xf32>
    %cst_17 = arith.constant 3.200000e+01 : f32
    %43 = vector.broadcast %cst_17 : f32 to vector<2x8x1xf32>
    %44 = arith.divf %42, %43 : vector<2x8x1xf32>
    %45 = vector.broadcast %44 : vector<2x8x1xf32> to vector<2x8x32xf32>
    %46 = arith.subf %40, %45 : vector<2x8x32xf32>
    %47 = arith.mulf %46, %46 : vector<2x8x32xf32>
    %cst_18 = arith.constant dense<0.000000e+00> : vector<2x8xf32>
    %48 = vector.multi_reduction <add>, %47, %cst_18 [2] : vector<2x8x32xf32> to vector<2x8xf32>
    %49 = vector.shape_cast %48 : vector<2x8xf32> to vector<2x8x1xf32>
    %cst_19 = arith.constant 3.200000e+01 : f32
    %50 = vector.broadcast %cst_19 : f32 to vector<2x8x1xf32>
    %51 = arith.divf %49, %50 : vector<2x8x1xf32>
    %52 = vector.broadcast %44 : vector<2x8x1xf32> to vector<2x8x32xf32>
    %53 = arith.subf %40, %52 : vector<2x8x32xf32>
    %cst_20 = arith.constant 9.99999997E-7 : f32
    %54 = vector.broadcast %cst_20 : f32 to vector<2x8x1xf32>
    %55 = arith.addf %51, %54 : vector<2x8x1xf32>
    %56 = math.rsqrt %55 : vector<2x8x1xf32>
    %57 = vector.broadcast %56 : vector<2x8x1xf32> to vector<2x8x32xf32>
    %58 = arith.mulf %53, %57 : vector<2x8x32xf32>
    %59 = vector.shape_cast %4 : vector<32xf32> to vector<1x1x32xf32>
    %60 = vector.broadcast %59 : vector<1x1x32xf32> to vector<2x8x32xf32>
    %61 = arith.mulf %58, %60 : vector<2x8x32xf32>
    %62 = vector.shape_cast %6 : vector<32xf32> to vector<1x1x32xf32>
    %63 = vector.broadcast %62 : vector<1x1x32xf32> to vector<2x8x32xf32>
    %64 = arith.addf %61, %63 : vector<2x8x32xf32>
    %65 = vector.shape_cast %64 : vector<2x8x32xf32> to vector<2x1x256xf32>
    %c0_21 = arith.constant 0 : index
    %c0_22 = arith.constant 0 : index
    %c0_23 = arith.constant 0 : index
    %66 = vector.load %arg6[%c0_21, %c0_22, %c0_23] : memref<2x1x256xf32, #tpu.memory_space<vmem>>, vector<2x1x256xf32>
    tpu.vector_store %arg6[%c0_21, %c0_22, %c0_23], %65 {strides = array<i32>} : memref<2x1x256xf32, #tpu.memory_space<vmem>>, vector<2x1x256xf32>,
    return
  }
  func.func @transform_0(%arg0: i32, %arg1: i32) -> (i32, i32, i32) {
    %c0_i32 = arith.constant 0 : i32
    %c0_i32_0 = arith.constant 0 : i32
    %c0_i32_1 = arith.constant 0 : i32
    return %arg0, %c0_i32, %c0_i32_0 : i32, i32, i32
  }
  func.func @transform_1(%arg0: i32, %arg1: i32) -> (i32, i32) {
    %c0_i32 = arith.constant 0 : i32
    %c0_i32_0 = arith.constant 0 : i32
    %c0_i32_1 = arith.constant 0 : i32
    return %c0_i32, %c0_i32_0 : i32, i32
  }
  func.func @transform_2(%arg0: i32, %arg1: i32) -> (i32, i32) {
    %c0_i32 = arith.constant 0 : i32
    %c0_i32_0 = arith.constant 0 : i32
    %c0_i32_1 = arith.constant 0 : i32
    return %c0_i32, %c0_i32_0 : i32, i32
  }
  func.func @transform_3(%arg0: i32, %arg1: i32) -> (i32, i32) {
    %c0_i32 = arith.constant 0 : i32
    %c0_i32_0 = arith.constant 0 : i32
    %c0_i32_1 = arith.constant 0 : i32
    return %c0_i32, %c0_i32_0 : i32, i32
  }
  func.func @transform_4(%arg0: i32, %arg1: i32) -> (i32, i32, i32) {
    %c0_i32 = arith.constant 0 : i32
    %c0_i32_0 = arith.constant 0 : i32
    %c0_i32_1 = arith.constant 0 : i32
    return %arg0, %c0_i32, %c0_i32_0 : i32, i32, i32
  }
}

</mosaic_0001>

<llo_original>
// kernel: tpu_custom_call.1
$region0: #{tpu_custom_call.1}
  #allocation0 [shape = 'u32[]', space=smem, size = 0x4, offset = 0x4, fixed_abs, tag = 'smem constant byte address 0x4 - core index']
  #allocation1 [shape = 'u32[144,128]{1,0:T(1,128)}', space=vmem, size = 0x12000, scoped, tag = 'internal scratch']
  %s0 = inlined_call_operand.hbm [shape: f32[2,8,32], index: 0, kind: input, shape index: {}]
  %s1 = inlined_call_operand.vmem [shape: f32[1,32], index: 1, kind: input, shape index: {}]
  %s2 = inlined_call_operand.vmem [shape: f32[1,32], index: 2, kind: input, shape index: {}]
  %s3 = inlined_call_operand.vmem [shape: f32[1,32], index: 3, kind: input, shape index: {}]
  %s4 = inlined_call_operand.hbm [shape: f32[2,1,256], index: 4, kind: output, shape index: {}]
  %s5 = sld [smem:[#allocation0]]
  $region30: #{tpu_custom_call.1} parent=0
    _
  %s7 = ssub.s32 1, %s5
  %s8 = scalar_select 0, %s7, %s5
  $region1: #{tpu_custom_call.1} parent=0
    #allocation2 [shape = 'u8[8192]{0}', space=vmem, size = 0x2000, scoped, tag = 'input window, operand 0, single buffered']
    #allocation3 [shape = 's32[1]{0}', space=sflag, size = 0x4, scoped, tag = 'scoped memory for tpu_custom_call.1']
    #allocation4 [shape = 's32[1]{0}', space=sflag, size = 0x4, scoped, tag = 'scoped memory for tpu_custom_call.1']
    #allocation5 [shape = 'u8[2048]{0}', space=vmem, size = 0x800, scoped, tag = 'output window, operand 0, single buffered']
    %9 = vsyncpa [#allocation3], 0
    %10 = vsyncpa [#allocation4], 0
    // Predicated region
    $region2: #{tpu_custom_call.1} parent=1 // pred_check
      _
    $region3: #{tpu_custom_call.1} parent=1 // pred_check_branch
      %12 = sbr.rel (0) target = $region5
    $region4: #{tpu_custom_call.1} parent=1 // pred_region
      %s14 = ssub.s32 256, 256
      %15 = vsyncadd [#allocation3], %s14
      %s16 = sshll.u32 [#allocation2], 4
      %s17 = int_to_ptr.vmem [resolvable:$true] %s16
      %22 = dma.hbm_to_vmem [thread:$0]  %s0, 256, %s17, [#allocation3], 128, 128, 8
    $region5: #{tpu_custom_call.1} parent=1 // pred_fallthru
      _
    // Predicated region
    $region6: #{tpu_custom_call.1} parent=1 // pred_check
      _
    $region7: #{tpu_custom_call.1} parent=1 // pred_check_branch
      %24 = sbr.rel (0) target = $region9
    $region8: #{tpu_custom_call.1} parent=1 // pred_region
      _
    $region9: #{tpu_custom_call.1} parent=1 // pred_fallthru
      _
    // Predicated region
    $region10: #{tpu_custom_call.1} parent=1 // pred_check
      _
    $region11: #{tpu_custom_call.1} parent=1 // pred_check_branch
      %26 = sbr.rel (0) target = $region13
    $region12: #{tpu_custom_call.1} parent=1 // pred_region
      _
    $region13: #{tpu_custom_call.1} parent=1 // pred_fallthru
      _
    // Predicated region
    $region14: #{tpu_custom_call.1} parent=1 // pred_check
      _
    $region15: #{tpu_custom_call.1} parent=1 // pred_check_branch
      %28 = sbr.rel (0) target = $region17
    $region16: #{tpu_custom_call.1} parent=1 // pred_region
      _
    $region17: #{tpu_custom_call.1} parent=1 // pred_fallthru
      _
    // Predicated region
    $region18: #{tpu_custom_call.1} parent=1 // pred_check
      _
    $region19: #{tpu_custom_call.1} parent=1 // pred_check_branch
      %30 = sbr.rel (0) target = $region21
    $region20: #{tpu_custom_call.1} parent=1 // pred_region
      %31 = dma.done [#allocation3], 256
    $region21: #{tpu_custom_call.1} parent=1 // pred_fallthru
      _
    %v32 = vld [vmem:[#allocation2] sm:$0xff]
    %v33 = vld [vmem:[#allocation2 + $0x8] sm:$0xff]
    %v34 = vld [vmem:[%s1] sm:$0x1]
    %v35 = vld [vmem:[%s2] sm:$0x1]
    %v36 = vld [vmem:[%s3] sm:$0x1]
    %vm37 = vcmask 261120
    %v39 = vsel %vm37, %v32, 0
    %41 = vmatprep.subr.mxu0 0.0
    %42 = vmatpush1.xpose.msra.mxu0 0.0
    %43 = vmatprep.subr.mxu0 0.0
    %44 = vmatpush1.xpose.msra.mxu0 0.0
    %45 = vmatprep.subr.mxu0 0.0
    %46 = vmatpush1.xpose.msra.mxu0 0.0
    %47 = vmatprep.subr.mxu0 0.0
    %48 = vmatpush1.xpose.msra.mxu0 0.0
    %49 = vmatprep.subr.mxu0 0.0
    %50 = vmatpush1.xpose.msra.mxu0 0.0
    %51 = vmatprep.subr.mxu0 0.0
    %52 = vmatpush1.xpose.msra.mxu0 0.0
    %53 = vmatprep.subr.mxu0 0.0
    %54 = vmatpush1.xpose.msra.mxu0 0.0
    %55 = vmatprep.subr.mxu0 0.0
    %56 = vmatpush1.xpose.msra.mxu0 0.0
    %57 = vmatprep.subr.mxu0 0.0
    %58 = vmatpush1.xpose.msra.mxu0 0.0
    %59 = vmatprep.subr.mxu0 0.0
    %60 = vmatpush1.xpose.msra.mxu0 0.0
    %61 = vmatprep.subr.mxu0 0.0
    %62 = vmatpush1.xpose.msra.mxu0 0.0
    %63 = vmatprep.subr.mxu0 0.0
    %64 = vmatpush1.xpose.msra.mxu0 0.0
    %65 = vmatprep.subr.mxu0 0.0
    %66 = vmatpush1.xpose.msra.mxu0 0.0
    %67 = vmatprep.subr.mxu0 0.0
    %68 = vmatpush1.xpose.msra.mxu0 0.0
    %69 = vmatprep.subr.mxu0 0.0
    %70 = vmatpush1.xpose.msra.mxu0 0.0
    %71 = vmatprep.subr.mxu0 0.0
    %72 = vmatpush1.xpose.msra.mxu0 %v39
    %73 = vmatprep.subr.mxu0 0.0
    %74 = vmatpush2.xpose.msra.mxu0 0.0
    %75 = vmatprep.subr.mxu0 0.0
    %76 = vmatpush2.xpose.msra.mxu0 0.0
    %77 = vmatprep.subr.mxu0 0.0
    %78 = vmatpush2.xpose.msra.mxu0 0.0
    %79 = vmatprep.subr.mxu0 0.0
    %80 = vmatpush2.xpose.msra.mxu0 0.0
    %81 = vmatprep.subr.mxu0 0.0
    %82 = vmatpush2.xpose.msra.mxu0 0.0
    %83 = vmatprep.subr.mxu0 0.0
    %84 = vmatpush2.xpose.msra.mxu0 0.0
    %85 = vmatprep.subr.mxu0 0.0
    %86 = vmatpush2.xpose.msra.mxu0 0.0
    %87 = vmatprep.subr.mxu0 0.0
    %88 = vmatpush2.xpose.msra.mxu0 0.0
    %89 = vmatprep.subr.mxu0 0.0
    %90 = vmatpush2.xpose.msra.mxu0 0.0
    %91 = vmatprep.subr.mxu0 0.0
    %92 = vmatpush2.xpose.msra.mxu0 0.0
    %93 = vmatprep.subr.mxu0 0.0
    %94 = vmatpush2.xpose.msra.mxu0 0.0
    %95 = vmatprep.subr.mxu0 0.0
    %96 = vmatpush2.xpose.msra.mxu0 0.0
    %97 = vmatprep.subr.mxu0 0.0
    %98 = vmatpush2.xpose.msra.mxu0 0.0
    %99 = vmatprep.subr.mxu0 0.0
    %100 = vmatpush2.xpose.msra.mxu0 0.0
    %101 = vmatprep.subr.mxu0 0.0
    %102 = vmatpush2.xpose.msra.mxu0 0.0
    %103 = vmatprep.subr.mxu0 0.0
    %104 = vmatpush2.xpose.msra.mxu0 0.0
    %105 = vmatprep.mubr.f32.mxu0 0.0
    %106 = vmatmul.mubr.f32.gmra.mxu0 %v39
    %v107 = vpop.f32.mrf.mxu0
    %v108 = vadd.f32 0.0, %v107
    %v109 = vpop.f32.mrf.mxu0
    %110 = vdwg.mxu0
    %v112 = vsel %vm37, %v33, 0
    %114 = vmatprep.subr.mxu0 0.0
    %115 = vmatpush1.xpose.msra.mxu0 0.0
    %116 = vmatprep.subr.mxu0 0.0
    %117 = vmatpush1.xpose.msra.mxu0 0.0
    %118 = vmatprep.subr.mxu0 0.0
    %119 = vmatpush1.xpose.msra.mxu0 0.0
    %120 = vmatprep.subr.mxu0 0.0
    %121 = vmatpush1.xpose.msra.mxu0 0.0
    %122 = vmatprep.subr.mxu0 0.0
    %123 = vmatpush1.xpose.msra.mxu0 0.0
    %124 = vmatprep.subr.mxu0 0.0
    %125 = vmatpush1.xpose.msra.mxu0 0.0
    %126 = vmatprep.subr.mxu0 0.0
    %127 = vmatpush1.xpose.msra.mxu0 0.0
    %128 = vmatprep.subr.mxu0 0.0
    %129 = vmatpush1.xpose.msra.mxu0 0.0
    %130 = vmatprep.subr.mxu0 0.0
    %131 = vmatpush1.xpose.msra.mxu0 0.0
    %132 = vmatprep.subr.mxu0 0.0
    %133 = vmatpush1.xpose.msra.mxu0 0.0
    %134 = vmatprep.subr.mxu0 0.0
    %135 = vmatpush1.xpose.msra.mxu0 0.0
    %136 = vmatprep.subr.mxu0 0.0
    %137 = vmatpush1.xpose.msra.mxu0 0.0
    %138 = vmatprep.subr.mxu0 0.0
    %139 = vmatpush1.xpose.msra.mxu0 0.0
    %140 = vmatprep.subr.mxu0 0.0
    %141 = vmatpush1.xpose.msra.mxu0 0.0
    %142 = vmatprep.subr.mxu0 0.0
    %143 = vmatpush1.xpose.msra.mxu0 0.0
    %144 = vmatprep.subr.mxu0 0.0
    %145 = vmatpush1.xpose.msra.mxu0 %v112
    %146 = vmatprep.subr.mxu0 0.0
    %147 = vmatpush2.xpose.msra.mxu0 0.0
    %148 = vmatprep.subr.mxu0 0.0
    %149 = vmatpush2.xpose.msra.mxu0 0.0
    %150 = vmatprep.subr.mxu0 0.0
    %151 = vmatpush2.xpose.msra.mxu0 0.0
    %152 = vmatprep.subr.mxu0 0.0
    %153 = vmatpush2.xpose.msra.mxu0 0.0
    %154 = vmatprep.subr.mxu0 0.0
    %155 = vmatpush2.xpose.msra.mxu0 0.0
    %156 = vmatprep.subr.mxu0 0.0
    %157 = vmatpush2.xpose.msra.mxu0 0.0
    %158 = vmatprep.subr.mxu0 0.0
    %159 = vmatpush2.xpose.msra.mxu0 0.0
    %160 = vmatprep.subr.mxu0 0.0
    %161 = vmatpush2.xpose.msra.mxu0 0.0
    %162 = vmatprep.subr.mxu0 0.0
    %163 = vmatpush2.xpose.msra.mxu0 0.0
    %164 = vmatprep.subr.mxu0 0.0
    %165 = vmatpush2.xpose.msra.mxu0 0.0
    %166 = vmatprep.subr.mxu0 0.0
    %167 = vmatpush2.xpose.msra.mxu0 0.0
    %168 = vmatprep.subr.mxu0 0.0
    %169 = vmatpush2.xpose.msra.mxu0 0.0
    %170 = vmatprep.subr.mxu0 0.0
    %171 = vmatpush2.xpose.msra.mxu0 0.0
    %172 = vmatprep.subr.mxu0 0.0
    %173 = vmatpush2.xpose.msra.mxu0 0.0
    %174 = vmatprep.subr.mxu0 0.0
    %175 = vmatpush2.xpose.msra.mxu0 0.0
    %176 = vmatprep.subr.mxu0 0.0
    %177 = vmatpush2.xpose.msra.mxu0 0.0
    %178 = vmatprep.mubr.f32.mxu0 0.0
    %179 = vmatmul.mubr.f32.gmra.mxu0 %v112
    %v180 = vpop.f32.mrf.mxu0
    %v181 = vadd.f32 0.0, %v180
    %v182 = vpop.f32.mrf.mxu0
    %183 = vdwg.mxu0
    %vm184 = vcmask 64512
    %v185 = vsel %vm184, %v108, -inf
    %186 = vmax.xlane.f32.xlu0 %v185
    %v187 = vpop.xlane.xlu0 %186
    %v188 = vsel %vm184, %v181, -inf
    %189 = vmax.xlane.f32.xlu0 %v188
    %v190 = vpop.xlane.xlu0 %189
    %v191 = vsub.f32 %v108, %v187
    %v192 = vsub.f32 %v181, %v190
    %v193 = vmul.f32 %v191, 1.442695
    %v194 = vpow.pop %v193
    %v195 = vmul.f32 %v192, 1.442695
    %v196 = vpow.pop %v195
    %v197 = vsel %vm184, %v194, 0.0
    %198 = vadd.xlane.f32.xlu0 %v197
    %v199 = vpop.xlane.xlu0 %198
    %v200 = vsel %vm184, %v196, 0.0
    %201 = vadd.xlane.f32.xlu0 %v200
    %v202 = vpop.xlane.xlu0 %201
    %v203 = vrcp.pop %v199
    %v204 = vrcp.pop %v202
    %v205 = vmul.f32 %v194, %v203
    %v206 = vmul.f32 %v196, %v204
    %v208 = vlaneseq
    %v209 = vshrl.u32 %v208, 7
    %v210 = vsub.s32 0, %v209
    %v211 = vrot.slane %v34, %v210
    %v213 = vmul.f32 %v32, %v211
    %v214 = vmul.f32 %v33, %v211
    %v215 = vsel %vm37, %v213, 0.0
    %216 = vadd.xlane.f32.xlu0 %v215
    %v217 = vpop.xlane.xlu0 %216
    %v218 = vsel %vm37, %v214, 0.0
    %219 = vadd.xlane.f32.xlu0 %v218
    %v220 = vpop.xlane.xlu0 %219
    %v223 = vlaneseq
    %v224 = vand.u32 %v223, 127
    %v225 = vlaneseq
    %v226 = vshrl.u32 %v225, 7
    %v227 = vsub.s32 %v224, %v226
    %v228 = vrot.slane %v217, %v227
    %v229 = vlaneseq
    %v230 = vshrl.u32 %v229, 7
    %v231 = vsub.s32 %v224, %v230
    %v232 = vrot.slane %v220, %v231
    %vm233 = vcmask 1041409
    %v234 = vsel %vm233, %v232, %v228
    %vm236 = vcmask 58368
    %v237 = vsel %vm236, %v234, -inf
    %238 = vmax.xlane.f32.xlu0 %v237
    %v239 = vpop.xlane.xlu0 %238
    %v240 = vadd.f32 %v239, 1.0
    %v241 = vadd.f32 %v240, 0.01
    %v243 = vlaneseq
    %v244 = vshrl.u32 %v243, 7
    %v245 = vsub.s32 0, %v244
    %v246 = vrot.slane %v241, %v245
    %v247 = vlaneseq
    %v248 = vshrl.u32 %v247, 7
    %v249 = vsub.s32 1, %v248
    %v250 = vrot.slane %v241, %v249
    %v253 = vsub.f32 %v217, %v246
    %v254 = vsub.f32 %v220, %v250
    %257 = vset.pattern.permute.xlu0 0
    %258 = vperm.xlu0 %257, %v253
    %v259 = vpop.permute.xlu0 %258
    %260 = vset.pattern.permute.xlu0 0
    %261 = vperm.xlu0 %260, %v254
    %v262 = vpop.permute.xlu0 %261
    %v263 = vlaneseq
    %v264 = vshrl.u32 %v263, 7
    %v265 = vsub.s32 %v224, %v264
    %v266 = vrot.slane %v259, %v265
    %v267 = vlaneseq
    %v268 = vshrl.u32 %v267, 7
    %v269 = vsub.s32 %v224, %v268
    %v270 = vrot.slane %v262, %v269
    %vm271 = vcmask 1042434
    %v272 = vsel %vm271, %v266, %v266
    %vm273 = vcmask 1043459
    %v274 = vsel %vm273, %v266, %v272
    %vm275 = vcmask 1044484
    %v276 = vsel %vm275, %v266, %v274
    %vm277 = vcmask 1045509
    %v278 = vsel %vm277, %v266, %v276
    %vm279 = vcmask 1046534
    %v280 = vsel %vm279, %v266, %v278
    %vm281 = vcmask 1047559
    %v282 = vsel %vm281, %v266, %v280
    %v283 = vsel %vm271, %v270, %v270
    %v284 = vsel %vm273, %v270, %v283
    %v285 = vsel %vm275, %v270, %v284
    %v286 = vsel %vm277, %v270, %v285
    %v287 = vsel %vm279, %v270, %v286
    %v288 = vsel %vm281, %v270, %v287
    %v291 = vadd.f32 %v205, %v282
    %v292 = vadd.f32 %v206, %v288
    %v293 = vmul.f32 %v291, 1.442695
    %v294 = vpow.pop %v293
    %v295 = vmul.f32 %v292, 1.442695
    %v296 = vpow.pop %v295
    %v297 = vsel %vm184, %v294, 0.0
    %298 = vadd.xlane.f32.xlu0 %v297
    %v299 = vpop.xlane.xlu0 %298
    %v300 = vsel %vm184, %v296, 0.0
    %301 = vadd.xlane.f32.xlu0 %v300
    %v302 = vpop.xlane.xlu0 %301
    %v303 = vrcp.pop %v299
    %v304 = vrcp.pop %v302
    %v305 = vmul.f32 %v294, %v303
    %v306 = vmul.f32 %v296, %v304
    %v308 = vsel %vm184, %v305, 0
    %310 = vmatprep.subr.mxu0 0.0
    %311 = vmatpush1.msra.mxu0 0.0
    %312 = vmatprep.subr.mxu0 0.0
    %313 = vmatpush1.msra.mxu0 0.0
    %314 = vmatprep.subr.mxu0 0.0
    %315 = vmatpush1.msra.mxu0 0.0
    %316 = vmatprep.subr.mxu0 0.0
    %317 = vmatpush1.msra.mxu0 0.0
    %318 = vmatprep.subr.mxu0 0.0
    %319 = vmatpush1.msra.mxu0 0.0
    %320 = vmatprep.subr.mxu0 0.0
    %321 = vmatpush1.msra.mxu0 0.0
    %322 = vmatprep.subr.mxu0 0.0
    %323 = vmatpush1.msra.mxu0 0.0
    %324 = vmatprep.subr.mxu0 0.0
    %325 = vmatpush1.msra.mxu0 0.0
    %326 = vmatprep.subr.mxu0 0.0
    %327 = vmatpush1.msra.mxu0 0.0
    %328 = vmatprep.subr.mxu0 0.0
    %329 = vmatpush1.msra.mxu0 0.0
    %330 = vmatprep.subr.mxu0 0.0
    %331 = vmatpush1.msra.mxu0 0.0
    %332 = vmatprep.subr.mxu0 0.0
    %333 = vmatpush1.msra.mxu0 0.0
    %334 = vmatprep.subr.mxu0 0.0
    %335 = vmatpush1.msra.mxu0 0.0
    %336 = vmatprep.subr.mxu0 0.0
    %337 = vmatpush1.msra.mxu0 0.0
    %338 = vmatprep.subr.mxu0 0.0
    %339 = vmatpush1.msra.mxu0 0.0
    %340 = vmatprep.subr.mxu0 0.0
    %341 = vmatpush1.msra.mxu0 %v32
    %342 = vmatprep.subr.mxu0 0.0
    %343 = vmatpush2.msra.mxu0 0.0
    %344 = vmatprep.subr.mxu0 0.0
    %345 = vmatpush2.msra.mxu0 0.0
    %346 = vmatprep.subr.mxu0 0.0
    %347 = vmatpush2.msra.mxu0 0.0
    %348 = vmatprep.subr.mxu0 0.0
    %349 = vmatpush2.msra.mxu0 0.0
    %350 = vmatprep.subr.mxu0 0.0
    %351 = vmatpush2.msra.mxu0 0.0
    %352 = vmatprep.subr.mxu0 0.0
    %353 = vmatpush2.msra.mxu0 0.0
    %354 = vmatprep.subr.mxu0 0.0
    %355 = vmatpush2.msra.mxu0 0.0
    %356 = vmatprep.subr.mxu0 0.0
    %357 = vmatpush2.msra.mxu0 0.0
    %358 = vmatprep.subr.mxu0 0.0
    %359 = vmatpush2.msra.mxu0 0.0
    %360 = vmatprep.subr.mxu0 0.0
    %361 = vmatpush2.msra.mxu0 0.0
    %362 = vmatprep.subr.mxu0 0.0
    %363 = vmatpush2.msra.mxu0 0.0
    %364 = vmatprep.subr.mxu0 0.0
    %365 = vmatpush2.msra.mxu0 0.0
    %366 = vmatprep.subr.mxu0 0.0
    %367 = vmatpush2.msra.mxu0 0.0
    %368 = vmatprep.subr.mxu0 0.0
    %369 = vmatpush2.msra.mxu0 0.0
    %370 = vmatprep.subr.mxu0 0.0
    %371 = vmatpush2.msra.mxu0 0.0
    %372 = vmatprep.subr.mxu0 0.0
    %373 = vmatpush2.msra.mxu0 0.0
    %374 = vmatprep.mubr.f32.mxu0 0.0
    %375 = vmatmul.mubr.f32.gmra.mxu0 %v308
    %v376 = vpop.f32.mrf.mxu0
    %v377 = vadd.f32 %v32, %v376
    %v378 = vpop.f32.mrf.mxu0
    %379 = vdwg.mxu0
    %v381 = vsel %vm184, %v306, 0
    %383 = vmatprep.subr.mxu0 0.0
    %384 = vmatpush1.msra.mxu0 0.0
    %385 = vmatprep.subr.mxu0 0.0
    %386 = vmatpush1.msra.mxu0 0.0
    %387 = vmatprep.subr.mxu0 0.0
    %388 = vmatpush1.msra.mxu0 0.0
    %389 = vmatprep.subr.mxu0 0.0
    %390 = vmatpush1.msra.mxu0 0.0
    %391 = vmatprep.subr.mxu0 0.0
    %392 = vmatpush1.msra.mxu0 0.0
    %393 = vmatprep.subr.mxu0 0.0
    %394 = vmatpush1.msra.mxu0 0.0
    %395 = vmatprep.subr.mxu0 0.0
    %396 = vmatpush1.msra.mxu0 0.0
    %397 = vmatprep.subr.mxu0 0.0
    %398 = vmatpush1.msra.mxu0 0.0
    %399 = vmatprep.subr.mxu0 0.0
    %400 = vmatpush1.msra.mxu0 0.0
    %401 = vmatprep.subr.mxu0 0.0
    %402 = vmatpush1.msra.mxu0 0.0
    %403 = vmatprep.subr.mxu0 0.0
    %404 = vmatpush1.msra.mxu0 0.0
    %405 = vmatprep.subr.mxu0 0.0
    %406 = vmatpush1.msra.mxu0 0.0
    %407 = vmatprep.subr.mxu0 0.0
    %408 = vmatpush1.msra.mxu0 0.0
    %409 = vmatprep.subr.mxu0 0.0
    %410 = vmatpush1.msra.mxu0 0.0
    %411 = vmatprep.subr.mxu0 0.0
    %412 = vmatpush1.msra.mxu0 0.0
    %413 = vmatprep.subr.mxu0 0.0
    %414 = vmatpush1.msra.mxu0 %v33
    %415 = vmatprep.subr.mxu0 0.0
    %416 = vmatpush2.msra.mxu0 0.0
    %417 = vmatprep.subr.mxu0 0.0
    %418 = vmatpush2.msra.mxu0 0.0
    %419 = vmatprep.subr.mxu0 0.0
    %420 = vmatpush2.msra.mxu0 0.0
    %421 = vmatprep.subr.mxu0 0.0
    %422 = vmatpush2.msra.mxu0 0.0
    %423 = vmatprep.subr.mxu0 0.0
    %424 = vmatpush2.msra.mxu0 0.0
    %425 = vmatprep.subr.mxu0 0.0
    %426 = vmatpush2.msra.mxu0 0.0
    %427 = vmatprep.subr.mxu0 0.0
    %428 = vmatpush2.msra.mxu0 0.0
    %429 = vmatprep.subr.mxu0 0.0
    %430 = vmatpush2.msra.mxu0 0.0
    %431 = vmatprep.subr.mxu0 0.0
    %432 = vmatpush2.msra.mxu0 0.0
    %433 = vmatprep.subr.mxu0 0.0
    %434 = vmatpush2.msra.mxu0 0.0
    %435 = vmatprep.subr.mxu0 0.0
    %436 = vmatpush2.msra.mxu0 0.0
    %437 = vmatprep.subr.mxu0 0.0
    %438 = vmatpush2.msra.mxu0 0.0
    %439 = vmatprep.subr.mxu0 0.0
    %440 = vmatpush2.msra.mxu0 0.0
    %441 = vmatprep.subr.mxu0 0.0
    %442 = vmatpush2.msra.mxu0 0.0
    %443 = vmatprep.subr.mxu0 0.0
    %444 = vmatpush2.msra.mxu0 0.0
    %445 = vmatprep.subr.mxu0 0.0
    %446 = vmatpush2.msra.mxu0 0.0
    %447 = vmatprep.mubr.f32.mxu0 0.0
    %448 = vmatmul.mubr.f32.gmra.mxu0 %v381
    %v449 = vpop.f32.mrf.mxu0
    %v450 = vadd.f32 %v33, %v449
    %v451 = vpop.f32.mrf.mxu0
    %452 = vdwg.mxu0
    %v453 = vsel %vm37, %v377, 0.0
    %454 = vadd.xlane.f32.xlu0 %v453
    %v455 = vpop.xlane.xlu0 %454
    %v456 = vsel %vm37, %v450, 0.0
    %457 = vadd.xlane.f32.xlu0 %v456
    %v458 = vpop.xlane.xlu0 %457
    %v459 = vrcp.pop 32.0
    %v460 = vmul.f32 %v455, %v459
    %v461 = vmul.f32 %v458, %v459
    %v462 = vsub.f32 %v377, %v460
    %v463 = vsub.f32 %v450, %v461
    %v464 = vmul.f32 %v462, %v462
    %v465 = vmul.f32 %v463, %v463
    %v466 = vsel %vm37, %v464, 0.0
    %467 = vadd.xlane.f32.xlu0 %v466
    %v468 = vpop.xlane.xlu0 %467
    %v469 = vsel %vm37, %v465, 0.0
    %470 = vadd.xlane.f32.xlu0 %v469
    %v471 = vpop.xlane.xlu0 %470
    %v472 = vmul.f32 %v468, %v459
    %v473 = vmul.f32 %v471, %v459
    %v474 = vadd.f32 %v472, 1e-06
    %v475 = vadd.f32 %v473, 1e-06
    %v476 = vrsqrt.pop %v474
    %v477 = vrsqrt.pop %v475
    %v478 = vmul.f32 %v462, %v476
    %v479 = vmul.f32 %v463, %v477
    %v481 = vlaneseq
    %v482 = vshrl.u32 %v481, 7
    %v483 = vsub.s32 0, %v482
    %v484 = vrot.slane %v35, %v483
    %v486 = vmul.f32 %v478, %v484
    %v487 = vmul.f32 %v479, %v484
    %v489 = vlaneseq
    %v490 = vshrl.u32 %v489, 7
    %v491 = vsub.s32 0, %v490
    %v492 = vrot.slane %v36, %v491
    %v494 = vadd.f32 %v486, %v492
    %v495 = vadd.f32 %v487, %v492
    %v496 = vcombine.high %v494, 0.0
    %v498 = vunpack.c.l.s4 1983009808
    %v499 = vunpack.c.0.s8 %v498
    %v500 = vlaneseq
    %v501 = vshrl.u32 %v500, 7
    %v502 = vsub.s32 %v499, %v501
    %v503 = vrot.slane %v494, %v502
    %v505 = vunpack.c.l.s4 1983009808
    %v506 = vunpack.c.0.s8 %v505
    %v507 = vlaneseq
    %v508 = vshrl.u32 %v507, 7
    %v509 = vsub.s32 %v506, %v508
    %v510 = vrot.slane %v496, %v509
    %v511 = vcombine.high %v503, 0.0
    %v513 = vunpack.c.l.s4 1934713408
    %v514 = vunpack.c.0.s8 %v513
    %v515 = vlaneseq
    %v516 = vshrl.u32 %v515, 7
    %v517 = vsub.s32 %v514, %v516
    %v518 = vrot.slane %v503, %v517
    %v520 = vunpack.c.l.s4 1934713408
    %v521 = vunpack.c.0.s8 %v520
    %v522 = vlaneseq
    %v523 = vshrl.u32 %v522, 7
    %v524 = vsub.s32 %v521, %v523
    %v525 = vrot.slane %v511, %v524
    %v526 = vcombine.high %v510, 0.0
    %v528 = vunpack.c.l.s4 1934713408
    %v529 = vunpack.c.0.s8 %v528
    %v530 = vlaneseq
    %v531 = vshrl.u32 %v530, 7
    %v532 = vsub.s32 %v529, %v531
    %v533 = vrot.slane %v510, %v532
    %v535 = vunpack.c.l.s4 1934713408
    %v536 = vunpack.c.0.s8 %v535
    %v537 = vlaneseq
    %v538 = vshrl.u32 %v537, 7
    %v539 = vsub.s32 %v536, %v538
    %v540 = vrot.slane %v526, %v539
    %v541 = vcombine.high %v518, 0.0
    %v542 = vcombine.high %v525, 0.0
    %v543 = vcombine.high %v533, 0.0
    %v544 = vcombine.high %v540, 0.0
    %v545 = vcombine.high %v495, 0.0
    %v547 = vunpack.c.l.s4 1983009808
    %v548 = vunpack.c.0.s8 %v547
    %v549 = vlaneseq
    %v550 = vshrl.u32 %v549, 7
    %v551 = vsub.s32 %v548, %v550
    %v552 = vrot.slane %v495, %v551
    %v554 = vunpack.c.l.s4 1983009808
    %v555 = vunpack.c.0.s8 %v554
    %v556 = vlaneseq
    %v557 = vshrl.u32 %v556, 7
    %v558 = vsub.s32 %v555, %v557
    %v559 = vrot.slane %v545, %v558
    %v560 = vcombine.high %v552, 0.0
    %v562 = vunpack.c.l.s4 1934713408
    %v563 = vunpack.c.0.s8 %v562
    %v564 = vlaneseq
    %v565 = vshrl.u32 %v564, 7
    %v566 = vsub.s32 %v563, %v565
    %v567 = vrot.slane %v552, %v566
    %v569 = vunpack.c.l.s4 1934713408
    %v570 = vunpack.c.0.s8 %v569
    %v571 = vlaneseq
    %v572 = vshrl.u32 %v571, 7
    %v573 = vsub.s32 %v570, %v572
    %v574 = vrot.slane %v560, %v573
    %v575 = vcombine.high %v559, 0.0
    %v577 = vunpack.c.l.s4 1934713408
    %v578 = vunpack.c.0.s8 %v577
    %v579 = vlaneseq
    %v580 = vshrl.u32 %v579, 7
    %v581 = vsub.s32 %v578, %v580
    %v582 = vrot.slane %v559, %v581
    %v584 = vunpack.c.l.s4 1934713408
    %v585 = vunpack.c.0.s8 %v584
    %v586 = vlaneseq
    %v587 = vshrl.u32 %v586, 7
    %v588 = vsub.s32 %v585, %v587
    %v589 = vrot.slane %v575, %v588
    %v590 = vcombine.high %v567, 0.0
    %v591 = vcombine.high %v574, 0.0
    %v592 = vcombine.high %v582, 0.0
    %v593 = vcombine.high %v589, 0.0
    %596 = vrot.lane.b32.xlu0 %v541, 32
    %v597 = vpop.permute.xlu0 %596
    %598 = vrot.lane.b32.xlu0 %v590, 32
    %v599 = vpop.permute.xlu0 %598
    %604 = vrot.lane.b32.xlu0 %v525, 64
    %v605 = vpop.permute.xlu0 %604
    %606 = vrot.lane.b32.xlu0 %v574, 64
    %v607 = vpop.permute.xlu0 %606
    %612 = vrot.lane.b32.xlu0 %v542, 96
    %v613 = vpop.permute.xlu0 %612
    %614 = vrot.lane.b32.xlu0 %v591, 96
    %v615 = vpop.permute.xlu0 %614
    %620 = vrot.lane.b32.xlu0 %v543, 32
    %v621 = vpop.permute.xlu0 %620
    %622 = vrot.lane.b32.xlu0 %v592, 32
    %v623 = vpop.permute.xlu0 %622
    %628 = vrot.lane.b32.xlu0 %v540, 64
    %v629 = vpop.permute.xlu0 %628
    %630 = vrot.lane.b32.xlu0 %v589, 64
    %v631 = vpop.permute.xlu0 %630
    %636 = vrot.lane.b32.xlu0 %v544, 96
    %v637 = vpop.permute.xlu0 %636
    %638 = vrot.lane.b32.xlu0 %v593, 96
    %v639 = vpop.permute.xlu0 %638
    %v642 = vsel %vm37, %v518, %v597
    %v643 = vsel %vm37, %v567, %v599
    %vm644 = vcmask 523264
    %v645 = vsel %vm644, %v642, %v605
    %v646 = vsel %vm644, %v643, %v607
    %vm647 = vcmask 785408
    %v648 = vsel %vm647, %v645, %v613
    %v649 = vsel %vm647, %v646, %v615
    %v650 = vsel %vm37, %v533, %v621
    %v651 = vsel %vm37, %v582, %v623
    %v652 = vsel %vm644, %v650, %v629
    %v653 = vsel %vm644, %v651, %v631
    %v654 = vsel %vm647, %v652, %v637
    %v655 = vsel %vm647, %v653, %v639
    %v660 = vcombine.low %v648, %v654
    %v662 = vunpack.c.l.s4 1966171168
    %v663 = vunpack.c.0.s8 %v662
    %v664 = vlaneseq
    %v665 = vshrl.u32 %v664, 7
    %v666 = vsub.s32 %v663, %v665
    %v667 = vrot.slane %v660, %v666
    %v669 = vunpack.c.l.s4 1966171168
    %v670 = vunpack.c.0.s8 %v669
    %v671 = vlaneseq
    %v672 = vshrl.u32 %v671, 7
    %v673 = vsub.s32 %v670, %v672
    %v674 = vrot.slane %v667, %v673
    %v675 = vcombine.low %v649, %v655
    %v677 = vunpack.c.l.s4 1966171168
    %v678 = vunpack.c.0.s8 %v677
    %v679 = vlaneseq
    %v680 = vshrl.u32 %v679, 7
    %v681 = vsub.s32 %v678, %v680
    %v682 = vrot.slane %v675, %v681
    %v684 = vunpack.c.l.s4 1966171168
    %v685 = vunpack.c.0.s8 %v684
    %v686 = vlaneseq
    %v687 = vshrl.u32 %v686, 7
    %v688 = vsub.s32 %v685, %v687
    %v689 = vrot.slane %v682, %v688
    %v692 = vlaneseq
    %vm693 = vcmp.ge.s32.totalorder %v692, 0
    %vm694 = vcmp.lt.s32.totalorder %v692, 256
    %vm695 = vmand %vm693, %vm694
    %696 = vst.msk [vmem:[#allocation5] sm:$0x3] %vm695, %v674
    %697 = vst.msk [vmem:[#allocation5 + $0x2] sm:$0x3] %vm695, %v689
    // Predicated region
    $region22: #{tpu_custom_call.1} parent=1 // pred_check
      _
    $region23: #{tpu_custom_call.1} parent=1 // pred_check_branch
      %699 = sbr.rel (0) target = $region25
    $region24: #{tpu_custom_call.1} parent=1 // pred_region
      %s701 = ssub.s32 64, 64
      %702 = vsyncadd [#allocation4], %s701
      %s703 = sshll.u32 [#allocation5], 4
      %s704 = int_to_ptr.vmem [resolvable:$true] %s703
      %709 = dma.vmem_to_hbm [thread:$0]  %s704, 64, %s4, [#allocation4], 32, 32, 2
    $region25: #{tpu_custom_call.1} parent=1 // pred_fallthru
      _
    // Predicated region
    $region26: #{tpu_custom_call.1} parent=1 // pred_check
      _
    $region27: #{tpu_custom_call.1} parent=1 // pred_check_branch
      %711 = sbr.rel (0) target = $region29
    $region28: #{tpu_custom_call.1} parent=1 // pred_region
      %712 = dma.done [#allocation4], 64
    $region29: #{tpu_custom_call.1} parent=1 // pred_fallthru
      _
    %713 = vsyncpa [#allocation3], 1
    %714 = vsyncpa [#allocation4], 1

</llo_original>
